<compile_context>
chip_gen: v6e
topology: v6e:2x2x1
jax: 0.10.0
libtpu: 0.0.40
codegen_flags: <defaults>
</compile_context>

<pallas_src>
import jax
import jax.numpy as jnp
from jax.experimental import pallas as pl
from jax.experimental.pallas import tpu as pltpu

LANE = 128


def _round_up(x, m):
    return (x + m - 1) // m * m


def _pad_to(a, shape):
    pads = [(0, t - s) for s, t in zip(a.shape, shape)]
    if any(p[1] for p in pads):
        return jnp.pad(a, pads)
    return a


def _vmem_cap_bytes():
    """~75% of physical VMEM (leaves headroom for Mosaic scratch / pipeline slack)."""
    try:
        cap = int(pltpu.get_tpu_info().vmem_capacity_bytes)
    except Exception:
        cap = 64 << 20  # conservative default (v7x per-core size)
    return max((cap * 3) // 4, 16 << 20)


def _make_mlp_kernel(n_linear, out_cols):
    """Whole MLP on one batch tile; weights stay VMEM-resident across grid steps."""

    def kernel(*refs):
        x_ref = refs[0]
        out_ref = refs[-1]
        param_refs = refs[1:-1]  # interleaved: w0, b0, w1, b1, ...

        h = x_ref[...]  # compute dtype (bf16 or f32)
        acc = None
        for i in range(n_linear):
            w = param_refs[2 * i][...]        # (D_in_pad, D_out_pad), compute dtype
            b = param_refs[2 * i + 1][...]    # (1, D_out_pad), f32
            acc = jnp.dot(h, w, preferred_element_type=jnp.float32) + b
            if i < n_linear - 1:
                h = jnp.maximum(acc, 0.0).astype(h.dtype)  # padded cols stay 0
        # Only the first `out_cols` columns of the padded slab are real; storing
        # just those keeps the output array (B_pad, out_cols) -> ~128x fewer HBM
        # write bytes than a full 128-wide f32 slab.
        out_ref[...] = acc[:, :out_cols].astype(out_ref.dtype)

    return kernel


def mlp_forward(x, params, *, compute_dtype=jnp.bfloat16, block_m=1024):
    """x: (B, D_in) f32.  params: list of (W (D_in, D_out), b (1, D_out)) f32 tuples.

    Returns (B, D_out_last) f32 (D_out_last == 1 for this module)."""
    n_linear = len(params)
    B, d_in = x.shape
    out_dim = params[-1][0].shape[1]
    cdt = jnp.dtype(compute_dtype)

    # Feature dims padded to lane multiples (128) so every matmul is lane-dense.
    sizes = [d_in] + [w.shape[1] for (w, _) in params]
    padded = [_round_up(s, LANE) for s in sizes]
    max_pad = max(padded)

    # Batch tiling; sublane packing = 8 rows (f32) / 16 rows (bf16).
    sub = 8 * (4 // cdt.itemsize)
    b_sub = _round_up(B, sub)
    tm = min(_round_up(block_m, sub), b_sub)
    # When the batch allows >= 2 tiles, ensure at least two so both v7x
    # TensorCores get work via the "parallel" grid axis.
    if b_sub >= 2 * sub:
        tm = min(tm, _round_up((b_sub + 1) // 2, sub))

    # Pad + cast params once in the wrapper (zero padding keeps math exact).
    flat_params = []
    for li, (w, b) in enumerate(params):
        w_p = _pad_to(w, (padded[li], padded[li + 1])).astype(cdt)
        b_p = _pad_to(b, (1, padded[li + 1])).astype(jnp.float32)
        flat_params += [w_p, b_p]
    param_bytes = sum(int(a.size) * a.dtype.itemsize for a in flat_params)

    # VMEM budget: resident params (x2, conservative for double-buffer fallback)
    # + double-buffered input/output tiles + per-layer hidden & f32 accumulator
    # intermediates that Mosaic materializes in VMEM once they exceed the vregs.
    def vmem_need(tm_):
        in_tile = 2 * tm_ * padded[0] * cdt.itemsize
        out_tile = 2 * tm_ * out_dim * 4
        inter = 2 * tm_ * max_pad * (cdt.itemsize + 4)
        return 2 * param_bytes + in_tile + out_tile + inter

    cap = _vmem_cap_bytes()
    # Shrink the batch tile if the estimate would not fit (mostly relevant for
    # very wide hidden layers on v7x's 64 MiB VMEM).
    # NOTE: if the *weights alone* outgrow VMEM, a layer-by-layer weight pipeline
    # (pltpu.emit_pipeline) would be needed; not required at these sizes.
    while tm > sub and vmem_need(tm) + (8 << 20) > cap:
        tm = max(_round_up(tm // 2, sub), sub)

    b_pad = _round_up(B, tm)
    num_tiles = b_pad // tm
    x_p = _pad_to(x, (b_pad, padded[0])).astype(cdt)

    vmem_limit = int(min(max(vmem_need(tm) + (8 << 20), 32 << 20), cap))

    def run(single_buffer_weights):
        wkw = {"pipeline_mode": pl.Buffered(1)} if single_buffer_weights else {}
        in_specs = [pl.BlockSpec((tm, padded[0]), lambda i: (i, 0))]
        for p in flat_params:
            # Constant index map -> block never changes across grid steps; with
            # Buffered(1) the pointless second buffer for these params is dropped.
            in_specs.append(pl.BlockSpec(p.shape, lambda i: (0, 0), **wkw))
        return pl.pallas_call(
            _make_mlp_kernel(n_linear, out_dim),
            out_shape=jax.ShapeDtypeStruct((b_pad, out_dim), jnp.float32),
            grid=(num_tiles,),
            in_specs=in_specs,
            out_specs=pl.BlockSpec((tm, out_dim), lambda i: (i, 0)),
            compiler_params=pltpu.CompilerParams(
                dimension_semantics=("parallel",),  # batch tiles across TCs (v7x)
                vmem_limit_bytes=vmem_limit,
            ),
        )(x_p, *flat_params)

    try:
        out_padded = jax.block_until_ready(run(True))
    except Exception:
        # pl.Buffered(1) / pipeline_mode unsupported on this jax version:
        # fall back to default (double-buffered) weight specs.
        out_padded = run(False)

    # Strip batch padding; columns are already only the real output columns.
    return out_padded[:B, :out_dim]


def init_params(key, input_size, hidden_sizes):
    """Deterministic PyTorch-style init: U(-1/sqrt(fan_in), 1/sqrt(fan_in))."""
    sizes = [input_size] + list(hidden_sizes) + [1]
    params = []
    for i in range(len(sizes) - 1):
        fan_in, fan_out = sizes[i], sizes[i + 1]
        key, kw, kb = jax.random.split(key, 3)
        bound = 1.0 / jnp.sqrt(float(fan_in))
        w = jax.random.uniform(kw, (fan_in, fan_out), jnp.float32, -bound, bound)
        b = jax.random.uniform(kb, (1, fan_out), jnp.float32, -bound, bound)
        params.append((w, b))
    return params


def reference_forward(x, params):
    h = x
    n = len(params)
    for i, (w, b) in enumerate(params):
        h = h @ w + b
        if i < n - 1:
            h = jnp.maximum(h, 0.0)
    return h


if __name__ == "__main__":
    key = jax.random.PRNGKey(0)
    k_x, k_p = jax.random.split(key)

    batch = 8
    input_layer_size = 32
    hidden_layer_sizes = [32, 16]

    x = jax.random.normal(k_x, (batch, input_layer_size), jnp.float32)
    params = init_params(k_p, input_layer_size, hidden_layer_sizes)
    ref = reference_forward(x, params)

    # f32 storage path: near bit-exact vs. the reference.
    out_f32 = jax.block_until_ready(
        mlp_forward(x, params, compute_dtype=jnp.float32))
    assert out_f32.shape == (batch, 1), out_f32.shape
    assert jnp.allclose(out_f32, ref, atol=1e-5, rtol=1e-5), (out_f32, ref)

    # bf16 storage + f32 accumulation (preferred on v6e/v7x): looser tolerance.
    out_bf16 = jax.block_until_ready(
        mlp_forward(x, params, compute_dtype=jnp.bfloat16))
    assert out_bf16.shape == (batch, 1), out_bf16.shape
    assert jnp.allclose(out_bf16, ref, atol=5e-2, rtol=5e-2), (out_bf16, ref)

    print("KERNEL_OK")
</pallas_src>

<mosaic_0001>
module attributes {stable_mosaic.version = 11 : i64} {
  func.func @kernel(%arg0: i32, %arg1: memref<8x128xf32, #tpu.memory_space<vmem>>, %arg2: memref<128x128xf32, #tpu.memory_space<vmem>>, %arg3: memref<1x128xf32, #tpu.memory_space<vmem>>, %arg4: memref<128x128xf32, #tpu.memory_space<vmem>>, %arg5: memref<1x128xf32, #tpu.memory_space<vmem>>, %arg6: memref<128x128xf32, #tpu.memory_space<vmem>>, %arg7: memref<1x128xf32, #tpu.memory_space<vmem>>, %arg8: memref<8x1xf32, #tpu.memory_space<vmem>>) attributes {dimension_semantics = [#tpu.dimension_semantics<parallel>], iteration_bounds = array<i64: 1>, scalar_prefetch = 0 : i64, scratch_operands = 0 : i64, tpu.core_type = #tpu.core_type<tc>, window_params = [{transform_indices = @transform_0, window_bounds = array<i64: 8, 128>}, {pipeline_mode = #tpu.pipeline_mode<synchronous>, transform_indices = @transform_1, window_bounds = array<i64: 128, 128>}, {pipeline_mode = #tpu.pipeline_mode<synchronous>, transform_indices = @transform_2, window_bounds = array<i64: 1, 128>}, {pipeline_mode = #tpu.pipeline_mode<synchronous>, transform_indices = @transform_3, window_bounds = array<i64: 128, 128>}, {pipeline_mode = #tpu.pipeline_mode<synchronous>, transform_indices = @transform_4, window_bounds = array<i64: 1, 128>}, {pipeline_mode = #tpu.pipeline_mode<synchronous>, transform_indices = @transform_5, window_bounds = array<i64: 128, 128>}, {pipeline_mode = #tpu.pipeline_mode<synchronous>, transform_indices = @transform_6, window_bounds = array<i64: 1, 128>}, {transform_indices = @transform_7, window_bounds = array<i64: 8, 1>}]} {
    %c0 = arith.constant 0 : index
    %c0_0 = arith.constant 0 : index
    %0 = vector.load %arg1[%c0, %c0_0] : memref<8x128xf32, #tpu.memory_space<vmem>>, vector<8x128xf32>
    %c0_1 = arith.constant 0 : index
    %c0_2 = arith.constant 0 : index
    %1 = vector.load %arg2[%c0_1, %c0_2] : memref<128x128xf32, #tpu.memory_space<vmem>>, vector<128x128xf32>
    %c0_3 = arith.constant 0 : index
    %c0_4 = arith.constant 0 : index
    %2 = vector.load %arg3[%c0_3, %c0_4] : memref<1x128xf32, #tpu.memory_space<vmem>>, vector<1x128xf32>
    %cst = arith.constant dense<0.000000e+00> : vector<8x128xf32>
    %3 = tpu.matmul %0, %1, %cst {dimension_numbers = #tpu.dot_dimension_numbers<[1], [0], [0], [1], [0, 0, 1, 1], [], []>} : vector<8x128xf32>, vector<128x128xf32>, vector<8x128xf32> -> vector<8x128xf32>
    %4 = vector.broadcast %2 : vector<1x128xf32> to vector<8x128xf32>
    %5 = arith.addf %3, %4 : vector<8x128xf32>
    %cst_5 = arith.constant 0.000000e+00 : f32
    %6 = vector.broadcast %cst_5 : f32 to vector<8x128xf32>
    %7 = arith.maximumf %5, %6 : vector<8x128xf32>
    %c0_6 = arith.constant 0 : index
    %c0_7 = arith.constant 0 : index
    %8 = vector.load %arg4[%c0_6, %c0_7] : memref<128x128xf32, #tpu.memory_space<vmem>>, vector<128x128xf32>
    %c0_8 = arith.constant 0 : index
    %c0_9 = arith.constant 0 : index
    %9 = vector.load %arg5[%c0_8, %c0_9] : memref<1x128xf32, #tpu.memory_space<vmem>>, vector<1x128xf32>
    %cst_10 = arith.constant dense<0.000000e+00> : vector<8x128xf32>
    %10 = tpu.matmul %7, %8, %cst_10 {dimension_numbers = #tpu.dot_dimension_numbers<[1], [0], [0], [1], [0, 0, 1, 1], [], []>} : vector<8x128xf32>, vector<128x128xf32>, vector<8x128xf32> -> vector<8x128xf32>
    %11 = vector.broadcast %9 : vector<1x128xf32> to vector<8x128xf32>
    %12 = arith.addf %10, %11 : vector<8x128xf32>
    %cst_11 = arith.constant 0.000000e+00 : f32
    %13 = vector.broadcast %cst_11 : f32 to vector<8x128xf32>
    %14 = arith.maximumf %12, %13 : vector<8x128xf32>
    %c0_12 = arith.constant 0 : index
    %c0_13 = arith.constant 0 : index
    %15 = vector.load %arg6[%c0_12, %c0_13] : memref<128x128xf32, #tpu.memory_space<vmem>>, vector<128x128xf32>
    %c0_14 = arith.constant 0 : index
    %c0_15 = arith.constant 0 : index
    %16 = vector.load %arg7[%c0_14, %c0_15] : memref<1x128xf32, #tpu.memory_space<vmem>>, vector<1x128xf32>
    %cst_16 = arith.constant dense<0.000000e+00> : vector<8x128xf32>
    %17 = tpu.matmul %14, %15, %cst_16 {dimension_numbers = #tpu.dot_dimension_numbers<[1], [0], [0], [1], [0, 0, 1, 1], [], []>} : vector<8x128xf32>, vector<128x128xf32>, vector<8x128xf32> -> vector<8x128xf32>
    %18 = vector.broadcast %16 : vector<1x128xf32> to vector<8x128xf32>
    %19 = arith.addf %17, %18 : vector<8x128xf32>
    %20 = vector.extract_strided_slice %19 {offsets = [0, 0], sizes = [8, 1], strides = [1, 1]} : vector<8x128xf32> to vector<8x1xf32>
    %c0_17 = arith.constant 0 : index
    %c0_18 = arith.constant 0 : index
    %21 = vector.load %arg8[%c0_17, %c0_18] : memref<8x1xf32, #tpu.memory_space<vmem>>, vector<8x1xf32>
    tpu.vector_store %arg8[%c0_17, %c0_18], %20 {strides = array<i32>} : memref<8x1xf32, #tpu.memory_space<vmem>>, vector<8x1xf32>,
    return
  }
  func.func @transform_0(%arg0: i32) -> (i32, i32) {
    %c0_i32 = arith.constant 0 : i32
    %c0_i32_0 = arith.constant 0 : i32
    return %arg0, %c0_i32 : i32, i32
  }
  func.func @transform_1(%arg0: i32) -> (i32, i32) {
    %c0_i32 = arith.constant 0 : i32
    %c0_i32_0 = arith.constant 0 : i32
    %c0_i32_1 = arith.constant 0 : i32
    return %c0_i32, %c0_i32_0 : i32, i32
  }
  func.func @transform_2(%arg0: i32) -> (i32, i32) {
    %c0_i32 = arith.constant 0 : i32
    %c0_i32_0 = arith.constant 0 : i32
    %c0_i32_1 = arith.constant 0 : i32
    return %c0_i32, %c0_i32_0 : i32, i32
  }
  func.func @transform_3(%arg0: i32) -> (i32, i32) {
    %c0_i32 = arith.constant 0 : i32
    %c0_i32_0 = arith.constant 0 : i32
    %c0_i32_1 = arith.constant 0 : i32
    return %c0_i32, %c0_i32_0 : i32, i32
  }
  func.func @transform_4(%arg0: i32) -> (i32, i32) {
    %c0_i32 = arith.constant 0 : i32
    %c0_i32_0 = arith.constant 0 : i32
    %c0_i32_1 = arith.constant 0 : i32
    return %c0_i32, %c0_i32_0 : i32, i32
  }
  func.func @transform_5(%arg0: i32) -> (i32, i32) {
    %c0_i32 = arith.constant 0 : i32
    %c0_i32_0 = arith.constant 0 : i32
    %c0_i32_1 = arith.constant 0 : i32
    return %c0_i32, %c0_i32_0 : i32, i32
  }
  func.func @transform_6(%arg0: i32) -> (i32, i32) {
    %c0_i32 = arith.constant 0 : i32
    %c0_i32_0 = arith.constant 0 : i32
    %c0_i32_1 = arith.constant 0 : i32
    return %c0_i32, %c0_i32_0 : i32, i32
  }
  func.func @transform_7(%arg0: i32) -> (i32, i32) {
    %c0_i32 = arith.constant 0 : i32
    %c0_i32_0 = arith.constant 0 : i32
    return %arg0, %c0_i32 : i32, i32
  }
}

module attributes {stable_mosaic.version = 11 : i64} {
  func.func @kernel(%arg0: i32, %arg1: memref<8x128xf32, #tpu.memory_space<vmem>>, %arg2: memref<128x128xf32, #tpu.memory_space<vmem>>, %arg3: memref<1x128xf32, #tpu.memory_space<vmem>>, %arg4: memref<128x128xf32, #tpu.memory_space<vmem>>, %arg5: memref<1x128xf32, #tpu.memory_space<vmem>>, %arg6: memref<128x128xf32, #tpu.memory_space<vmem>>, %arg7: memref<1x128xf32, #tpu.memory_space<vmem>>, %arg8: memref<8x1xf32, #tpu.memory_space<vmem>>) attributes {dimension_semantics = [#tpu.dimension_semantics<parallel>], iteration_bounds = array<i64: 1>, scalar_prefetch = 0 : i64, scratch_operands = 0 : i64, tpu.core_type = #tpu.core_type<tc>, window_params = [{transform_indices = @transform_0, window_bounds = array<i64: 8, 128>}, {pipeline_mode = #tpu.pipeline_mode<synchronous>, transform_indices = @transform_1, window_bounds = array<i64: 128, 128>}, {pipeline_mode = #tpu.pipeline_mode<synchronous>, transform_indices = @transform_2, window_bounds = array<i64: 1, 128>}, {pipeline_mode = #tpu.pipeline_mode<synchronous>, transform_indices = @transform_3, window_bounds = array<i64: 128, 128>}, {pipeline_mode = #tpu.pipeline_mode<synchronous>, transform_indices = @transform_4, window_bounds = array<i64: 1, 128>}, {pipeline_mode = #tpu.pipeline_mode<synchronous>, transform_indices = @transform_5, window_bounds = array<i64: 128, 128>}, {pipeline_mode = #tpu.pipeline_mode<synchronous>, transform_indices = @transform_6, window_bounds = array<i64: 1, 128>}, {transform_indices = @transform_7, window_bounds = array<i64: 8, 1>}]} {
    %c0 = arith.constant 0 : index
    %c0_0 = arith.constant 0 : index
    %0 = vector.load %arg1[%c0, %c0_0] : memref<8x128xf32, #tpu.memory_space<vmem>>, vector<8x128xf32>
    %c0_1 = arith.constant 0 : index
    %c0_2 = arith.constant 0 : index
    %1 = vector.load %arg2[%c0_1, %c0_2] : memref<128x128xf32, #tpu.memory_space<vmem>>, vector<128x128xf32>
    %c0_3 = arith.constant 0 : index
    %c0_4 = arith.constant 0 : index
    %2 = vector.load %arg3[%c0_3, %c0_4] : memref<1x128xf32, #tpu.memory_space<vmem>>, vector<1x128xf32>
    %cst = arith.constant dense<0.000000e+00> : vector<8x128xf32>
    %3 = tpu.matmul %0, %1, %cst {dimension_numbers = #tpu.dot_dimension_numbers<[1], [0], [0], [1], [0, 0, 1, 1], [], []>} : vector<8x128xf32>, vector<128x128xf32>, vector<8x128xf32> -> vector<8x128xf32>
    %4 = vector.broadcast %2 : vector<1x128xf32> to vector<8x128xf32>
    %5 = arith.addf %3, %4 : vector<8x128xf32>
    %cst_5 = arith.constant 0.000000e+00 : f32
    %6 = vector.broadcast %cst_5 : f32 to vector<8x128xf32>
    %7 = arith.maximumf %5, %6 : vector<8x128xf32>
    %c0_6 = arith.constant 0 : index
    %c0_7 = arith.constant 0 : index
    %8 = vector.load %arg4[%c0_6, %c0_7] : memref<128x128xf32, #tpu.memory_space<vmem>>, vector<128x128xf32>
    %c0_8 = arith.constant 0 : index
    %c0_9 = arith.constant 0 : index
    %9 = vector.load %arg5[%c0_8, %c0_9] : memref<1x128xf32, #tpu.memory_space<vmem>>, vector<1x128xf32>
    %cst_10 = arith.constant dense<0.000000e+00> : vector<8x128xf32>
    %10 = tpu.matmul %7, %8, %cst_10 {dimension_numbers = #tpu.dot_dimension_numbers<[1], [0], [0], [1], [0, 0, 1, 1], [], []>} : vector<8x128xf32>, vector<128x128xf32>, vector<8x128xf32> -> vector<8x128xf32>
    %11 = vector.broadcast %9 : vector<1x128xf32> to vector<8x128xf32>
    %12 = arith.addf %10, %11 : vector<8x128xf32>
    %cst_11 = arith.constant 0.000000e+00 : f32
    %13 = vector.broadcast %cst_11 : f32 to vector<8x128xf32>
    %14 = arith.maximumf %12, %13 : vector<8x128xf32>
    %c0_12 = arith.constant 0 : index
    %c0_13 = arith.constant 0 : index
    %15 = vector.load %arg6[%c0_12, %c0_13] : memref<128x128xf32, #tpu.memory_space<vmem>>, vector<128x128xf32>
    %c0_14 = arith.constant 0 : index
    %c0_15 = arith.constant 0 : index
    %16 = vector.load %arg7[%c0_14, %c0_15] : memref<1x128xf32, #tpu.memory_space<vmem>>, vector<1x128xf32>
    %cst_16 = arith.constant dense<0.000000e+00> : vector<8x128xf32>
    %17 = tpu.matmul %14, %15, %cst_16 {dimension_numbers = #tpu.dot_dimension_numbers<[1], [0], [0], [1], [0, 0, 1, 1], [], []>} : vector<8x128xf32>, vector<128x128xf32>, vector<8x128xf32> -> vector<8x128xf32>
    %18 = vector.broadcast %16 : vector<1x128xf32> to vector<8x128xf32>
    %19 = arith.addf %17, %18 : vector<8x128xf32>
    %20 = vector.extract_strided_slice %19 {offsets = [0, 0], sizes = [8, 1], strides = [1, 1]} : vector<8x128xf32> to vector<8x1xf32>
    %c0_17 = arith.constant 0 : index
    %c0_18 = arith.constant 0 : index
    %21 = vector.load %arg8[%c0_17, %c0_18] : memref<8x1xf32, #tpu.memory_space<vmem>>, vector<8x1xf32>
    tpu.vector_store %arg8[%c0_17, %c0_18], %20 {strides = array<i32>} : memref<8x1xf32, #tpu.memory_space<vmem>>, vector<8x1xf32>,
    return
  }
  func.func @transform_0(%arg0: i32) -> (i32, i32) {
    %c0_i32 = arith.constant 0 : i32
    %c0_i32_0 = arith.constant 0 : i32
    return %arg0, %c0_i32 : i32, i32
  }
  func.func @transform_1(%arg0: i32) -> (i32, i32) {
    %c0_i32 = arith.constant 0 : i32
    %c0_i32_0 = arith.constant 0 : i32
    %c0_i32_1 = arith.constant 0 : i32
    return %c0_i32, %c0_i32_0 : i32, i32
  }
  func.func @transform_2(%arg0: i32) -> (i32, i32) {
    %c0_i32 = arith.constant 0 : i32
    %c0_i32_0 = arith.constant 0 : i32
    %c0_i32_1 = arith.constant 0 : i32
    return %c0_i32, %c0_i32_0 : i32, i32
  }
  func.func @transform_3(%arg0: i32) -> (i32, i32) {
    %c0_i32 = arith.constant 0 : i32
    %c0_i32_0 = arith.constant 0 : i32
    %c0_i32_1 = arith.constant 0 : i32
    return %c0_i32, %c0_i32_0 : i32, i32
  }
  func.func @transform_4(%arg0: i32) -> (i32, i32) {
    %c0_i32 = arith.constant 0 : i32
    %c0_i32_0 = arith.constant 0 : i32
    %c0_i32_1 = arith.constant 0 : i32
    return %c0_i32, %c0_i32_0 : i32, i32
  }
  func.func @transform_5(%arg0: i32) -> (i32, i32) {
    %c0_i32 = arith.constant 0 : i32
    %c0_i32_0 = arith.constant 0 : i32
    %c0_i32_1 = arith.constant 0 : i32
    return %c0_i32, %c0_i32_0 : i32, i32
  }
  func.func @transform_6(%arg0: i32) -> (i32, i32) {
    %c0_i32 = arith.constant 0 : i32
    %c0_i32_0 = arith.constant 0 : i32
    %c0_i32_1 = arith.constant 0 : i32
    return %c0_i32, %c0_i32_0 : i32, i32
  }
  func.func @transform_7(%arg0: i32) -> (i32, i32) {
    %c0_i32 = arith.constant 0 : i32
    %c0_i32_0 = arith.constant 0 : i32
    return %arg0, %c0_i32 : i32, i32
  }
}

</mosaic_0001>

<llo_original>
// kernel: tpu_custom_call.1
$region0: #{tpu_custom_call.1}
  #allocation0 [shape = 'u32[]', space=smem, size = 0x4, offset = 0x4, fixed_abs, tag = 'smem constant byte address 0x4 - core index']
  #allocation1 [shape = 'u32[144,128]{1,0:T(1,128)}', space=vmem, size = 0x12000, scoped, tag = 'internal scratch']
  %s0 = inlined_call_operand.hbm [shape: f32[8,128], index: 0, kind: input, shape index: {}]
  %s1 = inlined_call_operand.hbm [shape: f32[128,128], index: 1, kind: input, shape index: {}]
  %s2 = inlined_call_operand.vmem [shape: f32[1,128], index: 2, kind: input, shape index: {}]
  %s3 = inlined_call_operand.hbm [shape: f32[128,128], index: 3, kind: input, shape index: {}]
  %s4 = inlined_call_operand.vmem [shape: f32[1,128], index: 4, kind: input, shape index: {}]
  %s5 = inlined_call_operand.hbm [shape: f32[128,128], index: 5, kind: input, shape index: {}]
  %s6 = inlined_call_operand.vmem [shape: f32[1,128], index: 6, kind: input, shape index: {}]
  %s7 = inlined_call_operand.vmem [shape: f32[8,1], index: 7, kind: output, shape index: {}]
  %s8 = sld [smem:[#allocation0]]
  $region54: #{tpu_custom_call.1} parent=0
    _
  %s10 = ssub.s32 1, %s8
  %s11 = scalar_select 0, %s10, %s8
  $region1: #{tpu_custom_call.1} parent=0
    #allocation2 [shape = 'u8[4096]{0}', space=vmem, size = 0x1000, scoped, tag = 'input window, operand 0, single buffered']
    #allocation3 [shape = 's32[1]{0}', space=sflag, size = 0x4, scoped, tag = 'scoped memory for tpu_custom_call.1']
    #allocation4 [shape = 'u8[65536]{0}', space=vmem, size = 0x10000, scoped, tag = 'input window, operand 1, single buffered']
    #allocation5 [shape = 's32[1]{0}', space=sflag, size = 0x4, scoped, tag = 'scoped memory for tpu_custom_call.1']
    #allocation6 [shape = 'u8[65536]{0}', space=vmem, size = 0x10000, scoped, tag = 'input window, operand 3, single buffered']
    #allocation7 [shape = 'u8[65536]{0}', space=vmem, size = 0x10000, scoped, tag = 'input window, operand 5, single buffered']
    #allocation8 [shape = 's32[1]{0}', space=sflag, size = 0x4, scoped, tag = 'scoped memory for tpu_custom_call.1']
    %12 = vsyncpa [#allocation3], 0
    %13 = vsyncpa [#allocation5], 0
    %14 = vsyncpa [#allocation8], 0
    // Predicated region
    $region2: #{tpu_custom_call.1} parent=1 // pred_check
      _
    $region3: #{tpu_custom_call.1} parent=1 // pred_check_branch
      %16 = sbr.rel (0) target = $region5
    $region4: #{tpu_custom_call.1} parent=1 // pred_region
      %s18 = ssub.s32 128, 128
      %19 = vsyncadd [#allocation3], %s18
      %s21 = sshll.u32 [#allocation2], 4
      %s22 = int_to_ptr.vmem [resolvable:$true] %s21
      %24 = dma.hbm_to_vmem [thread:$0]  %s0, 128, %s22, [#allocation3]
    $region5: #{tpu_custom_call.1} parent=1 // pred_fallthru
      _
    // Predicated region
    $region6: #{tpu_custom_call.1} parent=1 // pred_check
      _
    $region7: #{tpu_custom_call.1} parent=1 // pred_check_branch
      %26 = sbr.rel (0) target = $region9
    $region8: #{tpu_custom_call.1} parent=1 // pred_region
      %s28 = ssub.s32 2048, 2048
      %29 = vsyncadd [#allocation5], %s28
      %s30 = sshll.u32 [#allocation4], 4
      %s31 = int_to_ptr.vmem [resolvable:$true] %s30
      %36 = dma.hbm_to_vmem [thread:$0]  %s1, 2048, %s31, [#allocation5], 128, 128, 8
    $region9: #{tpu_custom_call.1} parent=1 // pred_fallthru
      _
    // Predicated region
    $region10: #{tpu_custom_call.1} parent=1 // pred_check
      _
    $region11: #{tpu_custom_call.1} parent=1 // pred_check_branch
      %38 = sbr.rel (0) target = $region13
    $region12: #{tpu_custom_call.1} parent=1 // pred_region
      _
    $region13: #{tpu_custom_call.1} parent=1 // pred_fallthru
      _
    // Predicated region
    $region14: #{tpu_custom_call.1} parent=1 // pred_check
      _
    $region15: #{tpu_custom_call.1} parent=1 // pred_check_branch
      %40 = sbr.rel (0) target = $region17
    $region16: #{tpu_custom_call.1} parent=1 // pred_region
      %s42 = ssub.s32 2048, 2048
      %43 = vsyncadd [#allocation5], %s42
      %s44 = sshll.u32 [#allocation6], 4
      %s45 = int_to_ptr.vmem [resolvable:$true] %s44
      %50 = dma.hbm_to_vmem [thread:$0]  %s3, 2048, %s45, [#allocation5], 128, 128, 8
    $region17: #{tpu_custom_call.1} parent=1 // pred_fallthru
      _
    // Predicated region
    $region18: #{tpu_custom_call.1} parent=1 // pred_check
      _
    $region19: #{tpu_custom_call.1} parent=1 // pred_check_branch
      %52 = sbr.rel (0) target = $region21
    $region20: #{tpu_custom_call.1} parent=1 // pred_region
      _
    $region21: #{tpu_custom_call.1} parent=1 // pred_fallthru
      _
    // Predicated region
    $region22: #{tpu_custom_call.1} parent=1 // pred_check
      _
    $region23: #{tpu_custom_call.1} parent=1 // pred_check_branch
      %54 = sbr.rel (0) target = $region25
    $region24: #{tpu_custom_call.1} parent=1 // pred_region
      %s56 = ssub.s32 2048, 2048
      %57 = vsyncadd [#allocation8], %s56
      %s58 = sshll.u32 [#allocation7], 4
      %s59 = int_to_ptr.vmem [resolvable:$true] %s58
      %64 = dma.hbm_to_vmem [thread:$0]  %s5, 2048, %s59, [#allocation8], 128, 128, 8
    $region25: #{tpu_custom_call.1} parent=1 // pred_fallthru
      _
    // Predicated region
    $region26: #{tpu_custom_call.1} parent=1 // pred_check
      _
    $region27: #{tpu_custom_call.1} parent=1 // pred_check_branch
      %66 = sbr.rel (0) target = $region29
    $region28: #{tpu_custom_call.1} parent=1 // pred_region
      _
    $region29: #{tpu_custom_call.1} parent=1 // pred_fallthru
      _
    // Predicated region
    $region30: #{tpu_custom_call.1} parent=1 // pred_check
      _
    $region31: #{tpu_custom_call.1} parent=1 // pred_check_branch
      %68 = sbr.rel (0) target = $region33
    $region32: #{tpu_custom_call.1} parent=1 // pred_region
      %69 = dma.done [#allocation3], 128
    $region33: #{tpu_custom_call.1} parent=1 // pred_fallthru
      _
    // Predicated region
    $region34: #{tpu_custom_call.1} parent=1 // pred_check
      _
    $region35: #{tpu_custom_call.1} parent=1 // pred_check_branch
      %71 = sbr.rel (0) target = $region37
    $region36: #{tpu_custom_call.1} parent=1 // pred_region
      %72 = dma.done [#allocation5], 2048
    $region37: #{tpu_custom_call.1} parent=1 // pred_fallthru
      _
    // Predicated region
    $region38: #{tpu_custom_call.1} parent=1 // pred_check
      _
    $region39: #{tpu_custom_call.1} parent=1 // pred_check_branch
      %74 = sbr.rel (0) target = $region41
    $region40: #{tpu_custom_call.1} parent=1 // pred_region
      %75 = dma.done [#allocation5], 2048
    $region41: #{tpu_custom_call.1} parent=1 // pred_fallthru
      _
    // Predicated region
    $region42: #{tpu_custom_call.1} parent=1 // pred_check
      _
    $region43: #{tpu_custom_call.1} parent=1 // pred_check_branch
      %77 = sbr.rel (0) target = $region45
    $region44: #{tpu_custom_call.1} parent=1 // pred_region
      %78 = dma.done [#allocation8], 2048
    $region45: #{tpu_custom_call.1} parent=1 // pred_fallthru
      _
    %v79 = vld [vmem:[#allocation2] sm:$0xff]
    %v80 = vld [vmem:[#allocation4] sm:$0xff]
    %v81 = vld [vmem:[#allocation4 + $0x8] sm:$0xff]
    %v82 = vld [vmem:[#allocation4 + $0x10] sm:$0xff]
    %v83 = vld [vmem:[#allocation4 + $0x18] sm:$0xff]
    %v84 = vld [vmem:[#allocation4 + $0x20] sm:$0xff]
    %v85 = vld [vmem:[#allocation4 + $0x28] sm:$0xff]
    %v86 = vld [vmem:[#allocation4 + $0x30] sm:$0xff]
    %v87 = vld [vmem:[#allocation4 + $0x38] sm:$0xff]
    %v88 = vld [vmem:[#allocation4 + $0x40] sm:$0xff]
    %v89 = vld [vmem:[#allocation4 + $0x48] sm:$0xff]
    %v90 = vld [vmem:[#allocation4 + $0x50] sm:$0xff]
    %v91 = vld [vmem:[#allocation4 + $0x58] sm:$0xff]
    %v92 = vld [vmem:[#allocation4 + $0x60] sm:$0xff]
    %v93 = vld [vmem:[#allocation4 + $0x68] sm:$0xff]
    %v94 = vld [vmem:[#allocation4 + $0x70] sm:$0xff]
    %v95 = vld [vmem:[#allocation4 + $0x78] sm:$0xff]
    %v96 = vld [vmem:[%s2] sm:$0x1]
    %v98 = vlaneseq
    %v99 = vshrl.u32 %v98, 7
    %v100 = vsub.s32 0, %v99
    %v101 = vrot.slane %v96, %v100
    %103 = vmatprep.subr.mxu0 0.0
    %104 = vmatpush1.msra.mxu0 %v95
    %105 = vmatprep.subr.mxu0 0.0
    %106 = vmatpush1.msra.mxu0 %v94
    %107 = vmatprep.subr.mxu0 0.0
    %108 = vmatpush1.msra.mxu0 %v93
    %109 = vmatprep.subr.mxu0 0.0
    %110 = vmatpush1.msra.mxu0 %v92
    %111 = vmatprep.subr.mxu0 0.0
    %112 = vmatpush1.msra.mxu0 %v91
    %113 = vmatprep.subr.mxu0 0.0
    %114 = vmatpush1.msra.mxu0 %v90
    %115 = vmatprep.subr.mxu0 0.0
    %116 = vmatpush1.msra.mxu0 %v89
    %117 = vmatprep.subr.mxu0 0.0
    %118 = vmatpush1.msra.mxu0 %v88
    %119 = vmatprep.subr.mxu0 0.0
    %120 = vmatpush1.msra.mxu0 %v87
    %121 = vmatprep.subr.mxu0 0.0
    %122 = vmatpush1.msra.mxu0 %v86
    %123 = vmatprep.subr.mxu0 0.0
    %124 = vmatpush1.msra.mxu0 %v85
    %125 = vmatprep.subr.mxu0 0.0
    %126 = vmatpush1.msra.mxu0 %v84
    %127 = vmatprep.subr.mxu0 0.0
    %128 = vmatpush1.msra.mxu0 %v83
    %129 = vmatprep.subr.mxu0 0.0
    %130 = vmatpush1.msra.mxu0 %v82
    %131 = vmatprep.subr.mxu0 0.0
    %132 = vmatpush1.msra.mxu0 %v81
    %133 = vmatprep.subr.mxu0 0.0
    %134 = vmatpush1.msra.mxu0 %v80
    %135 = vmatprep.subr.mxu0 0.0
    %136 = vmatpush2.msra.mxu0 0.0
    %137 = vmatprep.subr.mxu0 0.0
    %138 = vmatpush2.msra.mxu0 0.0
    %139 = vmatprep.subr.mxu0 0.0
    %140 = vmatpush2.msra.mxu0 0.0
    %141 = vmatprep.subr.mxu0 0.0
    %142 = vmatpush2.msra.mxu0 0.0
    %143 = vmatprep.subr.mxu0 0.0
    %144 = vmatpush2.msra.mxu0 0.0
    %145 = vmatprep.subr.mxu0 0.0
    %146 = vmatpush2.msra.mxu0 0.0
    %147 = vmatprep.subr.mxu0 0.0
    %148 = vmatpush2.msra.mxu0 0.0
    %149 = vmatprep.subr.mxu0 0.0
    %150 = vmatpush2.msra.mxu0 0.0
    %151 = vmatprep.subr.mxu0 0.0
    %152 = vmatpush2.msra.mxu0 0.0
    %153 = vmatprep.subr.mxu0 0.0
    %154 = vmatpush2.msra.mxu0 0.0
    %155 = vmatprep.subr.mxu0 0.0
    %156 = vmatpush2.msra.mxu0 0.0
    %157 = vmatprep.subr.mxu0 0.0
    %158 = vmatpush2.msra.mxu0 0.0
    %159 = vmatprep.subr.mxu0 0.0
    %160 = vmatpush2.msra.mxu0 0.0
    %161 = vmatprep.subr.mxu0 0.0
    %162 = vmatpush2.msra.mxu0 0.0
    %163 = vmatprep.subr.mxu0 0.0
    %164 = vmatpush2.msra.mxu0 0.0
    %165 = vmatprep.subr.mxu0 0.0
    %166 = vmatpush2.msra.mxu0 0.0
    %167 = vmatprep.mubr.f32.mxu0 0.0
    %168 = vmatmul.mubr.f32.gmra.mxu0 %v79
    %v169 = vpop.f32.mrf.mxu0
    %v170 = vadd.f32 %v101, %v169
    %v171 = vpop.f32.mrf.mxu0
    %172 = vdwg.mxu0
    %v173 = vmax.f32 %v170, 0.0
    %v174 = vld [vmem:[#allocation6] sm:$0xff]
    %v175 = vld [vmem:[#allocation6 + $0x8] sm:$0xff]
    %v176 = vld [vmem:[#allocation6 + $0x10] sm:$0xff]
    %v177 = vld [vmem:[#allocation6 + $0x18] sm:$0xff]
    %v178 = vld [vmem:[#allocation6 + $0x20] sm:$0xff]
    %v179 = vld [vmem:[#allocation6 + $0x28] sm:$0xff]
    %v180 = vld [vmem:[#allocation6 + $0x30] sm:$0xff]
    %v181 = vld [vmem:[#allocation6 + $0x38] sm:$0xff]
    %v182 = vld [vmem:[#allocation6 + $0x40] sm:$0xff]
    %v183 = vld [vmem:[#allocation6 + $0x48] sm:$0xff]
    %v184 = vld [vmem:[#allocation6 + $0x50] sm:$0xff]
    %v185 = vld [vmem:[#allocation6 + $0x58] sm:$0xff]
    %v186 = vld [vmem:[#allocation6 + $0x60] sm:$0xff]
    %v187 = vld [vmem:[#allocation6 + $0x68] sm:$0xff]
    %v188 = vld [vmem:[#allocation6 + $0x70] sm:$0xff]
    %v189 = vld [vmem:[#allocation6 + $0x78] sm:$0xff]
    %v190 = vld [vmem:[%s4] sm:$0x1]
    %v192 = vlaneseq
    %v193 = vshrl.u32 %v192, 7
    %v194 = vsub.s32 0, %v193
    %v195 = vrot.slane %v190, %v194
    %197 = vmatprep.subr.mxu0 0.0
    %198 = vmatpush1.msra.mxu0 %v189
    %199 = vmatprep.subr.mxu0 0.0
    %200 = vmatpush1.msra.mxu0 %v188
    %201 = vmatprep.subr.mxu0 0.0
    %202 = vmatpush1.msra.mxu0 %v187
    %203 = vmatprep.subr.mxu0 0.0
    %204 = vmatpush1.msra.mxu0 %v186
    %205 = vmatprep.subr.mxu0 0.0
    %206 = vmatpush1.msra.mxu0 %v185
    %207 = vmatprep.subr.mxu0 0.0
    %208 = vmatpush1.msra.mxu0 %v184
    %209 = vmatprep.subr.mxu0 0.0
    %210 = vmatpush1.msra.mxu0 %v183
    %211 = vmatprep.subr.mxu0 0.0
    %212 = vmatpush1.msra.mxu0 %v182
    %213 = vmatprep.subr.mxu0 0.0
    %214 = vmatpush1.msra.mxu0 %v181
    %215 = vmatprep.subr.mxu0 0.0
    %216 = vmatpush1.msra.mxu0 %v180
    %217 = vmatprep.subr.mxu0 0.0
    %218 = vmatpush1.msra.mxu0 %v179
    %219 = vmatprep.subr.mxu0 0.0
    %220 = vmatpush1.msra.mxu0 %v178
    %221 = vmatprep.subr.mxu0 0.0
    %222 = vmatpush1.msra.mxu0 %v177
    %223 = vmatprep.subr.mxu0 0.0
    %224 = vmatpush1.msra.mxu0 %v176
    %225 = vmatprep.subr.mxu0 0.0
    %226 = vmatpush1.msra.mxu0 %v175
    %227 = vmatprep.subr.mxu0 0.0
    %228 = vmatpush1.msra.mxu0 %v174
    %229 = vmatprep.subr.mxu0 0.0
    %230 = vmatpush2.msra.mxu0 0.0
    %231 = vmatprep.subr.mxu0 0.0
    %232 = vmatpush2.msra.mxu0 0.0
    %233 = vmatprep.subr.mxu0 0.0
    %234 = vmatpush2.msra.mxu0 0.0
    %235 = vmatprep.subr.mxu0 0.0
    %236 = vmatpush2.msra.mxu0 0.0
    %237 = vmatprep.subr.mxu0 0.0
    %238 = vmatpush2.msra.mxu0 0.0
    %239 = vmatprep.subr.mxu0 0.0
    %240 = vmatpush2.msra.mxu0 0.0
    %241 = vmatprep.subr.mxu0 0.0
    %242 = vmatpush2.msra.mxu0 0.0
    %243 = vmatprep.subr.mxu0 0.0
    %244 = vmatpush2.msra.mxu0 0.0
    %245 = vmatprep.subr.mxu0 0.0
    %246 = vmatpush2.msra.mxu0 0.0
    %247 = vmatprep.subr.mxu0 0.0
    %248 = vmatpush2.msra.mxu0 0.0
    %249 = vmatprep.subr.mxu0 0.0
    %250 = vmatpush2.msra.mxu0 0.0
    %251 = vmatprep.subr.mxu0 0.0
    %252 = vmatpush2.msra.mxu0 0.0
    %253 = vmatprep.subr.mxu0 0.0
    %254 = vmatpush2.msra.mxu0 0.0
    %255 = vmatprep.subr.mxu0 0.0
    %256 = vmatpush2.msra.mxu0 0.0
    %257 = vmatprep.subr.mxu0 0.0
    %258 = vmatpush2.msra.mxu0 0.0
    %259 = vmatprep.subr.mxu0 0.0
    %260 = vmatpush2.msra.mxu0 0.0
    %261 = vmatprep.mubr.f32.mxu0 0.0
    %262 = vmatmul.mubr.f32.gmra.mxu0 %v173
    %v263 = vpop.f32.mrf.mxu0
    %v264 = vadd.f32 %v195, %v263
    %v265 = vpop.f32.mrf.mxu0
    %266 = vdwg.mxu0
    %v267 = vmax.f32 %v264, 0.0
    %v268 = vld [vmem:[#allocation7] sm:$0xff]
    %v269 = vld [vmem:[#allocation7 + $0x8] sm:$0xff]
    %v270 = vld [vmem:[#allocation7 + $0x10] sm:$0xff]
    %v271 = vld [vmem:[#allocation7 + $0x18] sm:$0xff]
    %v272 = vld [vmem:[#allocation7 + $0x20] sm:$0xff]
    %v273 = vld [vmem:[#allocation7 + $0x28] sm:$0xff]
    %v274 = vld [vmem:[#allocation7 + $0x30] sm:$0xff]
    %v275 = vld [vmem:[#allocation7 + $0x38] sm:$0xff]
    %v276 = vld [vmem:[#allocation7 + $0x40] sm:$0xff]
    %v277 = vld [vmem:[#allocation7 + $0x48] sm:$0xff]
    %v278 = vld [vmem:[#allocation7 + $0x50] sm:$0xff]
    %v279 = vld [vmem:[#allocation7 + $0x58] sm:$0xff]
    %v280 = vld [vmem:[#allocation7 + $0x60] sm:$0xff]
    %v281 = vld [vmem:[#allocation7 + $0x68] sm:$0xff]
    %v282 = vld [vmem:[#allocation7 + $0x70] sm:$0xff]
    %v283 = vld [vmem:[#allocation7 + $0x78] sm:$0xff]
    %v284 = vld [vmem:[%s6] sm:$0x1]
    %v286 = vlaneseq
    %v287 = vshrl.u32 %v286, 7
    %v288 = vsub.s32 0, %v287
    %v289 = vrot.slane %v284, %v288
    %291 = vmatprep.subr.mxu0 0.0
    %292 = vmatpush1.msra.mxu0 %v283
    %293 = vmatprep.subr.mxu0 0.0
    %294 = vmatpush1.msra.mxu0 %v282
    %295 = vmatprep.subr.mxu0 0.0
    %296 = vmatpush1.msra.mxu0 %v281
    %297 = vmatprep.subr.mxu0 0.0
    %298 = vmatpush1.msra.mxu0 %v280
    %299 = vmatprep.subr.mxu0 0.0
    %300 = vmatpush1.msra.mxu0 %v279
    %301 = vmatprep.subr.mxu0 0.0
    %302 = vmatpush1.msra.mxu0 %v278
    %303 = vmatprep.subr.mxu0 0.0
    %304 = vmatpush1.msra.mxu0 %v277
    %305 = vmatprep.subr.mxu0 0.0
    %306 = vmatpush1.msra.mxu0 %v276
    %307 = vmatprep.subr.mxu0 0.0
    %308 = vmatpush1.msra.mxu0 %v275
    %309 = vmatprep.subr.mxu0 0.0
    %310 = vmatpush1.msra.mxu0 %v274
    %311 = vmatprep.subr.mxu0 0.0
    %312 = vmatpush1.msra.mxu0 %v273
    %313 = vmatprep.subr.mxu0 0.0
    %314 = vmatpush1.msra.mxu0 %v272
    %315 = vmatprep.subr.mxu0 0.0
    %316 = vmatpush1.msra.mxu0 %v271
    %317 = vmatprep.subr.mxu0 0.0
    %318 = vmatpush1.msra.mxu0 %v270
    %319 = vmatprep.subr.mxu0 0.0
    %320 = vmatpush1.msra.mxu0 %v269
    %321 = vmatprep.subr.mxu0 0.0
    %322 = vmatpush1.msra.mxu0 %v268
    %323 = vmatprep.subr.mxu0 0.0
    %324 = vmatpush2.msra.mxu0 0.0
    %325 = vmatprep.subr.mxu0 0.0
    %326 = vmatpush2.msra.mxu0 0.0
    %327 = vmatprep.subr.mxu0 0.0
    %328 = vmatpush2.msra.mxu0 0.0
    %329 = vmatprep.subr.mxu0 0.0
    %330 = vmatpush2.msra.mxu0 0.0
    %331 = vmatprep.subr.mxu0 0.0
    %332 = vmatpush2.msra.mxu0 0.0
    %333 = vmatprep.subr.mxu0 0.0
    %334 = vmatpush2.msra.mxu0 0.0
    %335 = vmatprep.subr.mxu0 0.0
    %336 = vmatpush2.msra.mxu0 0.0
    %337 = vmatprep.subr.mxu0 0.0
    %338 = vmatpush2.msra.mxu0 0.0
    %339 = vmatprep.subr.mxu0 0.0
    %340 = vmatpush2.msra.mxu0 0.0
    %341 = vmatprep.subr.mxu0 0.0
    %342 = vmatpush2.msra.mxu0 0.0
    %343 = vmatprep.subr.mxu0 0.0
    %344 = vmatpush2.msra.mxu0 0.0
    %345 = vmatprep.subr.mxu0 0.0
    %346 = vmatpush2.msra.mxu0 0.0
    %347 = vmatprep.subr.mxu0 0.0
    %348 = vmatpush2.msra.mxu0 0.0
    %349 = vmatprep.subr.mxu0 0.0
    %350 = vmatpush2.msra.mxu0 0.0
    %351 = vmatprep.subr.mxu0 0.0
    %352 = vmatpush2.msra.mxu0 0.0
    %353 = vmatprep.subr.mxu0 0.0
    %354 = vmatpush2.msra.mxu0 0.0
    %355 = vmatprep.mubr.f32.mxu0 0.0
    %356 = vmatmul.mubr.f32.gmra.mxu0 %v267
    %v357 = vpop.f32.mrf.mxu0
    %v358 = vadd.f32 %v289, %v357
    %v359 = vpop.f32.mrf.mxu0
    %360 = vdwg.mxu0
    %vm361 = vcmask 7168
    %362 = vst.msk [vmem:[%s7] sm:$0xff] %vm361, %v358
    // Predicated region
    $region46: #{tpu_custom_call.1} parent=1 // pred_check
      _
    $region47: #{tpu_custom_call.1} parent=1 // pred_check_branch
      %364 = sbr.rel (0) target = $region49
    $region48: #{tpu_custom_call.1} parent=1 // pred_region
      _
    $region49: #{tpu_custom_call.1} parent=1 // pred_fallthru
      _
    // Predicated region
    $region50: #{tpu_custom_call.1} parent=1 // pred_check
      _
    $region51: #{tpu_custom_call.1} parent=1 // pred_check_branch
      %366 = sbr.rel (0) target = $region53
    $region52: #{tpu_custom_call.1} parent=1 // pred_region
      _
    $region53: #{tpu_custom_call.1} parent=1 // pred_fallthru
      _
    %367 = vsyncpa [#allocation3], 1
    %368 = vsyncpa [#allocation5], 1
    %369 = vsyncpa [#allocation8], 1

// kernel: tpu_custom_call.1
$region0: #{tpu_custom_call.1}
  #allocation0 [shape = 'u32[]', space=smem, size = 0x4, offset = 0x4, fixed_abs, tag = 'smem constant byte address 0x4 - core index']
  #allocation1 [shape = 'u32[144,128]{1,0:T(1,128)}', space=vmem, size = 0x12000, scoped, tag = 'internal scratch']
  %s0 = inlined_call_operand.hbm [shape: f32[8,128], index: 0, kind: input, shape index: {}]
  %s1 = inlined_call_operand.hbm [shape: f32[128,128], index: 1, kind: input, shape index: {}]
  %s2 = inlined_call_operand.vmem [shape: f32[1,128], index: 2, kind: input, shape index: {}]
  %s3 = inlined_call_operand.hbm [shape: f32[128,128], index: 3, kind: input, shape index: {}]
  %s4 = inlined_call_operand.vmem [shape: f32[1,128], index: 4, kind: input, shape index: {}]
  %s5 = inlined_call_operand.hbm [shape: f32[128,128], index: 5, kind: input, shape index: {}]
  %s6 = inlined_call_operand.vmem [shape: f32[1,128], index: 6, kind: input, shape index: {}]
  %s7 = inlined_call_operand.vmem [shape: f32[8,1], index: 7, kind: output, shape index: {}]
  %s8 = sld [smem:[#allocation0]]
  $region54: #{tpu_custom_call.1} parent=0
    _
  %s10 = ssub.s32 1, %s8
  %s11 = scalar_select 0, %s10, %s8
  $region1: #{tpu_custom_call.1} parent=0
    #allocation2 [shape = 'u8[4096]{0}', space=vmem, size = 0x1000, scoped, tag = 'input window, operand 0, single buffered']
    #allocation3 [shape = 's32[1]{0}', space=sflag, size = 0x4, scoped, tag = 'scoped memory for tpu_custom_call.1']
    #allocation4 [shape = 'u8[65536]{0}', space=vmem, size = 0x10000, scoped, tag = 'input window, operand 1, single buffered']
    #allocation5 [shape = 's32[1]{0}', space=sflag, size = 0x4, scoped, tag = 'scoped memory for tpu_custom_call.1']
    #allocation6 [shape = 'u8[65536]{0}', space=vmem, size = 0x10000, scoped, tag = 'input window, operand 3, single buffered']
    #allocation7 [shape = 'u8[65536]{0}', space=vmem, size = 0x10000, scoped, tag = 'input window, operand 5, single buffered']
    #allocation8 [shape = 's32[1]{0}', space=sflag, size = 0x4, scoped, tag = 'scoped memory for tpu_custom_call.1']
    %12 = vsyncpa [#allocation3], 0
    %13 = vsyncpa [#allocation5], 0
    %14 = vsyncpa [#allocation8], 0
    // Predicated region
    $region2: #{tpu_custom_call.1} parent=1 // pred_check
      _
    $region3: #{tpu_custom_call.1} parent=1 // pred_check_branch
      %16 = sbr.rel (0) target = $region5
    $region4: #{tpu_custom_call.1} parent=1 // pred_region
      %s18 = ssub.s32 128, 128
      %19 = vsyncadd [#allocation3], %s18
      %s21 = sshll.u32 [#allocation2], 4
      %s22 = int_to_ptr.vmem [resolvable:$true] %s21
      %24 = dma.hbm_to_vmem [thread:$0]  %s0, 128, %s22, [#allocation3]
    $region5: #{tpu_custom_call.1} parent=1 // pred_fallthru
      _
    // Predicated region
    $region6: #{tpu_custom_call.1} parent=1 // pred_check
      _
    $region7: #{tpu_custom_call.1} parent=1 // pred_check_branch
      %26 = sbr.rel (0) target = $region9
    $region8: #{tpu_custom_call.1} parent=1 // pred_region
      %s28 = ssub.s32 2048, 2048
      %29 = vsyncadd [#allocation5], %s28
      %s30 = sshll.u32 [#allocation4], 4
      %s31 = int_to_ptr.vmem [resolvable:$true] %s30
      %36 = dma.hbm_to_vmem [thread:$0]  %s1, 2048, %s31, [#allocation5], 128, 128, 8
    $region9: #{tpu_custom_call.1} parent=1 // pred_fallthru
      _
    // Predicated region
    $region10: #{tpu_custom_call.1} parent=1 // pred_check
      _
    $region11: #{tpu_custom_call.1} parent=1 // pred_check_branch
      %38 = sbr.rel (0) target = $region13
    $region12: #{tpu_custom_call.1} parent=1 // pred_region
      _
    $region13: #{tpu_custom_call.1} parent=1 // pred_fallthru
      _
    // Predicated region
    $region14: #{tpu_custom_call.1} parent=1 // pred_check
      _
    $region15: #{tpu_custom_call.1} parent=1 // pred_check_branch
      %40 = sbr.rel (0) target = $region17
    $region16: #{tpu_custom_call.1} parent=1 // pred_region
      %s42 = ssub.s32 2048, 2048
      %43 = vsyncadd [#allocation5], %s42
      %s44 = sshll.u32 [#allocation6], 4
      %s45 = int_to_ptr.vmem [resolvable:$true] %s44
      %50 = dma.hbm_to_vmem [thread:$0]  %s3, 2048, %s45, [#allocation5], 128, 128, 8
    $region17: #{tpu_custom_call.1} parent=1 // pred_fallthru
      _
    // Predicated region
    $region18: #{tpu_custom_call.1} parent=1 // pred_check
      _
    $region19: #{tpu_custom_call.1} parent=1 // pred_check_branch
      %52 = sbr.rel (0) target = $region21
    $region20: #{tpu_custom_call.1} parent=1 // pred_region
      _
    $region21: #{tpu_custom_call.1} parent=1 // pred_fallthru
      _
    // Predicated region
    $region22: #{tpu_custom_call.1} parent=1 // pred_check
      _
    $region23: #{tpu_custom_call.1} parent=1 // pred_check_branch
      %54 = sbr.rel (0) target = $region25
    $region24: #{tpu_custom_call.1} parent=1 // pred_region
      %s56 = ssub.s32 2048, 2048
      %57 = vsyncadd [#allocation8], %s56
      %s58 = sshll.u32 [#allocation7], 4
      %s59 = int_to_ptr.vmem [resolvable:$true] %s58
      %64 = dma.hbm_to_vmem [thread:$0]  %s5, 2048, %s59, [#allocation8], 128, 128, 8
    $region25: #{tpu_custom_call.1} parent=1 // pred_fallthru
      _
    // Predicated region
    $region26: #{tpu_custom_call.1} parent=1 // pred_check
      _
    $region27: #{tpu_custom_call.1} parent=1 // pred_check_branch
      %66 = sbr.rel (0) target = $region29
    $region28: #{tpu_custom_call.1} parent=1 // pred_region
      _
    $region29: #{tpu_custom_call.1} parent=1 // pred_fallthru
      _
    // Predicated region
    $region30: #{tpu_custom_call.1} parent=1 // pred_check
      _
    $region31: #{tpu_custom_call.1} parent=1 // pred_check_branch
      %68 = sbr.rel (0) target = $region33
    $region32: #{tpu_custom_call.1} parent=1 // pred_region
      %69 = dma.done [#allocation3], 128
    $region33: #{tpu_custom_call.1} parent=1 // pred_fallthru
      _
    // Predicated region
    $region34: #{tpu_custom_call.1} parent=1 // pred_check
      _
    $region35: #{tpu_custom_call.1} parent=1 // pred_check_branch
      %71 = sbr.rel (0) target = $region37
    $region36: #{tpu_custom_call.1} parent=1 // pred_region
      %72 = dma.done [#allocation5], 2048
    $region37: #{tpu_custom_call.1} parent=1 // pred_fallthru
      _
    // Predicated region
    $region38: #{tpu_custom_call.1} parent=1 // pred_check
      _
    $region39: #{tpu_custom_call.1} parent=1 // pred_check_branch
      %74 = sbr.rel (0) target = $region41
    $region40: #{tpu_custom_call.1} parent=1 // pred_region
      %75 = dma.done [#allocation5], 2048
    $region41: #{tpu_custom_call.1} parent=1 // pred_fallthru
      _
    // Predicated region
    $region42: #{tpu_custom_call.1} parent=1 // pred_check
      _
    $region43: #{tpu_custom_call.1} parent=1 // pred_check_branch
      %77 = sbr.rel (0) target = $region45
    $region44: #{tpu_custom_call.1} parent=1 // pred_region
      %78 = dma.done [#allocation8], 2048
    $region45: #{tpu_custom_call.1} parent=1 // pred_fallthru
      _
    %v79 = vld [vmem:[#allocation2] sm:$0xff]
    %v80 = vld [vmem:[#allocation4] sm:$0xff]
    %v81 = vld [vmem:[#allocation4 + $0x8] sm:$0xff]
    %v82 = vld [vmem:[#allocation4 + $0x10] sm:$0xff]
    %v83 = vld [vmem:[#allocation4 + $0x18] sm:$0xff]
    %v84 = vld [vmem:[#allocation4 + $0x20] sm:$0xff]
    %v85 = vld [vmem:[#allocation4 + $0x28] sm:$0xff]
    %v86 = vld [vmem:[#allocation4 + $0x30] sm:$0xff]
    %v87 = vld [vmem:[#allocation4 + $0x38] sm:$0xff]
    %v88 = vld [vmem:[#allocation4 + $0x40] sm:$0xff]
    %v89 = vld [vmem:[#allocation4 + $0x48] sm:$0xff]
    %v90 = vld [vmem:[#allocation4 + $0x50] sm:$0xff]
    %v91 = vld [vmem:[#allocation4 + $0x58] sm:$0xff]
    %v92 = vld [vmem:[#allocation4 + $0x60] sm:$0xff]
    %v93 = vld [vmem:[#allocation4 + $0x68] sm:$0xff]
    %v94 = vld [vmem:[#allocation4 + $0x70] sm:$0xff]
    %v95 = vld [vmem:[#allocation4 + $0x78] sm:$0xff]
    %v96 = vld [vmem:[%s2] sm:$0x1]
    %v98 = vlaneseq
    %v99 = vshrl.u32 %v98, 7
    %v100 = vsub.s32 0, %v99
    %v101 = vrot.slane %v96, %v100
    %103 = vmatprep.subr.mxu0 0.0
    %104 = vmatpush1.msra.mxu0 %v95
    %105 = vmatprep.subr.mxu0 0.0
    %106 = vmatpush1.msra.mxu0 %v94
    %107 = vmatprep.subr.mxu0 0.0
    %108 = vmatpush1.msra.mxu0 %v93
    %109 = vmatprep.subr.mxu0 0.0
    %110 = vmatpush1.msra.mxu0 %v92
    %111 = vmatprep.subr.mxu0 0.0
    %112 = vmatpush1.msra.mxu0 %v91
    %113 = vmatprep.subr.mxu0 0.0
    %114 = vmatpush1.msra.mxu0 %v90
    %115 = vmatprep.subr.mxu0 0.0
    %116 = vmatpush1.msra.mxu0 %v89
    %117 = vmatprep.subr.mxu0 0.0
    %118 = vmatpush1.msra.mxu0 %v88
    %119 = vmatprep.subr.mxu0 0.0
    %120 = vmatpush1.msra.mxu0 %v87
    %121 = vmatprep.subr.mxu0 0.0
    %122 = vmatpush1.msra.mxu0 %v86
    %123 = vmatprep.subr.mxu0 0.0
    %124 = vmatpush1.msra.mxu0 %v85
    %125 = vmatprep.subr.mxu0 0.0
    %126 = vmatpush1.msra.mxu0 %v84
    %127 = vmatprep.subr.mxu0 0.0
    %128 = vmatpush1.msra.mxu0 %v83
    %129 = vmatprep.subr.mxu0 0.0
    %130 = vmatpush1.msra.mxu0 %v82
    %131 = vmatprep.subr.mxu0 0.0
    %132 = vmatpush1.msra.mxu0 %v81
    %133 = vmatprep.subr.mxu0 0.0
    %134 = vmatpush1.msra.mxu0 %v80
    %135 = vmatprep.subr.mxu0 0.0
    %136 = vmatpush2.msra.mxu0 0.0
    %137 = vmatprep.subr.mxu0 0.0
    %138 = vmatpush2.msra.mxu0 0.0
    %139 = vmatprep.subr.mxu0 0.0
    %140 = vmatpush2.msra.mxu0 0.0
    %141 = vmatprep.subr.mxu0 0.0
    %142 = vmatpush2.msra.mxu0 0.0
    %143 = vmatprep.subr.mxu0 0.0
    %144 = vmatpush2.msra.mxu0 0.0
    %145 = vmatprep.subr.mxu0 0.0
    %146 = vmatpush2.msra.mxu0 0.0
    %147 = vmatprep.subr.mxu0 0.0
    %148 = vmatpush2.msra.mxu0 0.0
    %149 = vmatprep.subr.mxu0 0.0
    %150 = vmatpush2.msra.mxu0 0.0
    %151 = vmatprep.subr.mxu0 0.0
    %152 = vmatpush2.msra.mxu0 0.0
    %153 = vmatprep.subr.mxu0 0.0
    %154 = vmatpush2.msra.mxu0 0.0
    %155 = vmatprep.subr.mxu0 0.0
    %156 = vmatpush2.msra.mxu0 0.0
    %157 = vmatprep.subr.mxu0 0.0
    %158 = vmatpush2.msra.mxu0 0.0
    %159 = vmatprep.subr.mxu0 0.0
    %160 = vmatpush2.msra.mxu0 0.0
    %161 = vmatprep.subr.mxu0 0.0
    %162 = vmatpush2.msra.mxu0 0.0
    %163 = vmatprep.subr.mxu0 0.0
    %164 = vmatpush2.msra.mxu0 0.0
    %165 = vmatprep.subr.mxu0 0.0
    %166 = vmatpush2.msra.mxu0 0.0
    %167 = vmatprep.mubr.f32.mxu0 0.0
    %168 = vmatmul.mubr.f32.gmra.mxu0 %v79
    %v169 = vpop.f32.mrf.mxu0
    %v170 = vadd.f32 %v101, %v169
    %v171 = vpop.f32.mrf.mxu0
    %172 = vdwg.mxu0
    %v173 = vmax.f32 %v170, 0.0
    %v174 = vld [vmem:[#allocation6] sm:$0xff]
    %v175 = vld [vmem:[#allocation6 + $0x8] sm:$0xff]
    %v176 = vld [vmem:[#allocation6 + $0x10] sm:$0xff]
    %v177 = vld [vmem:[#allocation6 + $0x18] sm:$0xff]
    %v178 = vld [vmem:[#allocation6 + $0x20] sm:$0xff]
    %v179 = vld [vmem:[#allocation6 + $0x28] sm:$0xff]
    %v180 = vld [vmem:[#allocation6 + $0x30] sm:$0xff]
    %v181 = vld [vmem:[#allocation6 + $0x38] sm:$0xff]
    %v182 = vld [vmem:[#allocation6 + $0x40] sm:$0xff]
    %v183 = vld [vmem:[#allocation6 + $0x48] sm:$0xff]
    %v184 = vld [vmem:[#allocation6 + $0x50] sm:$0xff]
    %v185 = vld [vmem:[#allocation6 + $0x58] sm:$0xff]
    %v186 = vld [vmem:[#allocation6 + $0x60] sm:$0xff]
    %v187 = vld [vmem:[#allocation6 + $0x68] sm:$0xff]
    %v188 = vld [vmem:[#allocation6 + $0x70] sm:$0xff]
    %v189 = vld [vmem:[#allocation6 + $0x78] sm:$0xff]
    %v190 = vld [vmem:[%s4] sm:$0x1]
    %v192 = vlaneseq
    %v193 = vshrl.u32 %v192, 7
    %v194 = vsub.s32 0, %v193
    %v195 = vrot.slane %v190, %v194
    %197 = vmatprep.subr.mxu0 0.0
    %198 = vmatpush1.msra.mxu0 %v189
    %199 = vmatprep.subr.mxu0 0.0
    %200 = vmatpush1.msra.mxu0 %v188
    %201 = vmatprep.subr.mxu0 0.0
    %202 = vmatpush1.msra.mxu0 %v187
    %203 = vmatprep.subr.mxu0 0.0
    %204 = vmatpush1.msra.mxu0 %v186
    %205 = vmatprep.subr.mxu0 0.0
    %206 = vmatpush1.msra.mxu0 %v185
    %207 = vmatprep.subr.mxu0 0.0
    %208 = vmatpush1.msra.mxu0 %v184
    %209 = vmatprep.subr.mxu0 0.0
    %210 = vmatpush1.msra.mxu0 %v183
    %211 = vmatprep.subr.mxu0 0.0
    %212 = vmatpush1.msra.mxu0 %v182
    %213 = vmatprep.subr.mxu0 0.0
    %214 = vmatpush1.msra.mxu0 %v181
    %215 = vmatprep.subr.mxu0 0.0
    %216 = vmatpush1.msra.mxu0 %v180
    %217 = vmatprep.subr.mxu0 0.0
    %218 = vmatpush1.msra.mxu0 %v179
    %219 = vmatprep.subr.mxu0 0.0
    %220 = vmatpush1.msra.mxu0 %v178
    %221 = vmatprep.subr.mxu0 0.0
    %222 = vmatpush1.msra.mxu0 %v177
    %223 = vmatprep.subr.mxu0 0.0
    %224 = vmatpush1.msra.mxu0 %v176
    %225 = vmatprep.subr.mxu0 0.0
    %226 = vmatpush1.msra.mxu0 %v175
    %227 = vmatprep.subr.mxu0 0.0
    %228 = vmatpush1.msra.mxu0 %v174
    %229 = vmatprep.subr.mxu0 0.0
    %230 = vmatpush2.msra.mxu0 0.0
    %231 = vmatprep.subr.mxu0 0.0
    %232 = vmatpush2.msra.mxu0 0.0
    %233 = vmatprep.subr.mxu0 0.0
    %234 = vmatpush2.msra.mxu0 0.0
    %235 = vmatprep.subr.mxu0 0.0
    %236 = vmatpush2.msra.mxu0 0.0
    %237 = vmatprep.subr.mxu0 0.0
    %238 = vmatpush2.msra.mxu0 0.0
    %239 = vmatprep.subr.mxu0 0.0
    %240 = vmatpush2.msra.mxu0 0.0
    %241 = vmatprep.subr.mxu0 0.0
    %242 = vmatpush2.msra.mxu0 0.0
    %243 = vmatprep.subr.mxu0 0.0
    %244 = vmatpush2.msra.mxu0 0.0
    %245 = vmatprep.subr.mxu0 0.0
    %246 = vmatpush2.msra.mxu0 0.0
    %247 = vmatprep.subr.mxu0 0.0
    %248 = vmatpush2.msra.mxu0 0.0
    %249 = vmatprep.subr.mxu0 0.0
    %250 = vmatpush2.msra.mxu0 0.0
    %251 = vmatprep.subr.mxu0 0.0
    %252 = vmatpush2.msra.mxu0 0.0
    %253 = vmatprep.subr.mxu0 0.0
    %254 = vmatpush2.msra.mxu0 0.0
    %255 = vmatprep.subr.mxu0 0.0
    %256 = vmatpush2.msra.mxu0 0.0
    %257 = vmatprep.subr.mxu0 0.0
    %258 = vmatpush2.msra.mxu0 0.0
    %259 = vmatprep.subr.mxu0 0.0
    %260 = vmatpush2.msra.mxu0 0.0
    %261 = vmatprep.mubr.f32.mxu0 0.0
    %262 = vmatmul.mubr.f32.gmra.mxu0 %v173
    %v263 = vpop.f32.mrf.mxu0
    %v264 = vadd.f32 %v195, %v263
    %v265 = vpop.f32.mrf.mxu0
    %266 = vdwg.mxu0
    %v267 = vmax.f32 %v264, 0.0
    %v268 = vld [vmem:[#allocation7] sm:$0xff]
    %v269 = vld [vmem:[#allocation7 + $0x8] sm:$0xff]
    %v270 = vld [vmem:[#allocation7 + $0x10] sm:$0xff]
    %v271 = vld [vmem:[#allocation7 + $0x18] sm:$0xff]
    %v272 = vld [vmem:[#allocation7 + $0x20] sm:$0xff]
    %v273 = vld [vmem:[#allocation7 + $0x28] sm:$0xff]
    %v274 = vld [vmem:[#allocation7 + $0x30] sm:$0xff]
    %v275 = vld [vmem:[#allocation7 + $0x38] sm:$0xff]
    %v276 = vld [vmem:[#allocation7 + $0x40] sm:$0xff]
    %v277 = vld [vmem:[#allocation7 + $0x48] sm:$0xff]
    %v278 = vld [vmem:[#allocation7 + $0x50] sm:$0xff]
    %v279 = vld [vmem:[#allocation7 + $0x58] sm:$0xff]
    %v280 = vld [vmem:[#allocation7 + $0x60] sm:$0xff]
    %v281 = vld [vmem:[#allocation7 + $0x68] sm:$0xff]
    %v282 = vld [vmem:[#allocation7 + $0x70] sm:$0xff]
    %v283 = vld [vmem:[#allocation7 + $0x78] sm:$0xff]
    %v284 = vld [vmem:[%s6] sm:$0x1]
    %v286 = vlaneseq
    %v287 = vshrl.u32 %v286, 7
    %v288 = vsub.s32 0, %v287
    %v289 = vrot.slane %v284, %v288
    %291 = vmatprep.subr.mxu0 0.0
    %292 = vmatpush1.msra.mxu0 %v283
    %293 = vmatprep.subr.mxu0 0.0
    %294 = vmatpush1.msra.mxu0 %v282
    %295 = vmatprep.subr.mxu0 0.0
    %296 = vmatpush1.msra.mxu0 %v281
    %297 = vmatprep.subr.mxu0 0.0
    %298 = vmatpush1.msra.mxu0 %v280
    %299 = vmatprep.subr.mxu0 0.0
    %300 = vmatpush1.msra.mxu0 %v279
    %301 = vmatprep.subr.mxu0 0.0
    %302 = vmatpush1.msra.mxu0 %v278
    %303 = vmatprep.subr.mxu0 0.0
    %304 = vmatpush1.msra.mxu0 %v277
    %305 = vmatprep.subr.mxu0 0.0
    %306 = vmatpush1.msra.mxu0 %v276
    %307 = vmatprep.subr.mxu0 0.0
    %308 = vmatpush1.msra.mxu0 %v275
    %309 = vmatprep.subr.mxu0 0.0
    %310 = vmatpush1.msra.mxu0 %v274
    %311 = vmatprep.subr.mxu0 0.0
    %312 = vmatpush1.msra.mxu0 %v273
    %313 = vmatprep.subr.mxu0 0.0
    %314 = vmatpush1.msra.mxu0 %v272
    %315 = vmatprep.subr.mxu0 0.0
    %316 = vmatpush1.msra.mxu0 %v271
    %317 = vmatprep.subr.mxu0 0.0
    %318 = vmatpush1.msra.mxu0 %v270
    %319 = vmatprep.subr.mxu0 0.0
    %320 = vmatpush1.msra.mxu0 %v269
    %321 = vmatprep.subr.mxu0 0.0
    %322 = vmatpush1.msra.mxu0 %v268
    %323 = vmatprep.subr.mxu0 0.0
    %324 = vmatpush2.msra.mxu0 0.0
    %325 = vmatprep.subr.mxu0 0.0
    %326 = vmatpush2.msra.mxu0 0.0
    %327 = vmatprep.subr.mxu0 0.0
    %328 = vmatpush2.msra.mxu0 0.0
    %329 = vmatprep.subr.mxu0 0.0
    %330 = vmatpush2.msra.mxu0 0.0
    %331 = vmatprep.subr.mxu0 0.0
    %332 = vmatpush2.msra.mxu0 0.0
    %333 = vmatprep.subr.mxu0 0.0
    %334 = vmatpush2.msra.mxu0 0.0
    %335 = vmatprep.subr.mxu0 0.0
    %336 = vmatpush2.msra.mxu0 0.0
    %337 = vmatprep.subr.mxu0 0.0
    %338 = vmatpush2.msra.mxu0 0.0
    %339 = vmatprep.subr.mxu0 0.0
    %340 = vmatpush2.msra.mxu0 0.0
    %341 = vmatprep.subr.mxu0 0.0
    %342 = vmatpush2.msra.mxu0 0.0
    %343 = vmatprep.subr.mxu0 0.0
    %344 = vmatpush2.msra.mxu0 0.0
    %345 = vmatprep.subr.mxu0 0.0
    %346 = vmatpush2.msra.mxu0 0.0
    %347 = vmatprep.subr.mxu0 0.0
    %348 = vmatpush2.msra.mxu0 0.0
    %349 = vmatprep.subr.mxu0 0.0
    %350 = vmatpush2.msra.mxu0 0.0
    %351 = vmatprep.subr.mxu0 0.0
    %352 = vmatpush2.msra.mxu0 0.0
    %353 = vmatprep.subr.mxu0 0.0
    %354 = vmatpush2.msra.mxu0 0.0
    %355 = vmatprep.mubr.f32.mxu0 0.0
    %356 = vmatmul.mubr.f32.gmra.mxu0 %v267
    %v357 = vpop.f32.mrf.mxu0
    %v358 = vadd.f32 %v289, %v357
    %v359 = vpop.f32.mrf.mxu0
    %360 = vdwg.mxu0
    %vm361 = vcmask 7168
    %362 = vst.msk [vmem:[%s7] sm:$0xff] %vm361, %v358
    // Predicated region
    $region46: #{tpu_custom_call.1} parent=1 // pred_check
      _
    $region47: #{tpu_custom_call.1} parent=1 // pred_check_branch
      %364 = sbr.rel (0) target = $region49
    $region48: #{tpu_custom_call.1} parent=1 // pred_region
      _
    $region49: #{tpu_custom_call.1} parent=1 // pred_fallthru
      _
    // Predicated region
    $region50: #{tpu_custom_call.1} parent=1 // pred_check
      _
    $region51: #{tpu_custom_call.1} parent=1 // pred_check_branch
      %366 = sbr.rel (0) target = $region53
    $region52: #{tpu_custom_call.1} parent=1 // pred_region
      _
    $region53: #{tpu_custom_call.1} parent=1 // pred_fallthru
      _
    %367 = vsyncpa [#allocation3], 1
    %368 = vsyncpa [#allocation5], 1
    %369 = vsyncpa [#allocation8], 1

</llo_original>
